<compile_context>
chip_gen: v7x
topology: tpu7x:2x2x1
jax: 0.10.0
libtpu: 0.0.40
codegen_flags: <defaults>
</compile_context>

<pallas_src>
import jax
import jax.numpy as jnp
from jax.experimental import pallas as pl
from jax.experimental.pallas import tpu as pltpu


def _w_to_wplus_kernel(w_ref, out_ref):
    # w_ref:   [TB, D]     (VMEM)
    # out_ref: [TB, L * D] (VMEM) -- lane-dense, flattened layout of [TB, L, D]
    _, d = w_ref.shape
    num_layers = out_ref.shape[1] // d
    w = w_ref[...]                      # single input tile, stays resident

    if d % 128 == 0:
        # Production path (D multiple of 128): per-layer lane-aligned unmasked
        # stores; vreg pressure stays at one input tile (no L-times broadcast
        # intermediate).
        for l in range(num_layers):
            out_ref[:, l * d:(l + 1) * d] = w
    else:
        # Small-D path (e.g. demo D=32): compose one lane-dense row so the
        # store is a single wide (L*D-lane) store rather than L masked
        # narrow stores.
        out_ref[...] = jnp.concatenate([w] * num_layers, axis=-1)


def input_latent_w_to_wplus(w, wplus_shape, *, block_b=None,
                            out_block_bytes=8 * 1024 * 1024):
    """Replicates latent `w` across the style-layer axis: [B, D] -> [B, L, D].

    Args:
      w:            [B, D] array.
      wplus_shape:  (B, L, D) target shape (mirrors the PyTorch module's
                    self.wplus_shape).  L is consumed; B and D are validated.
      block_b:      optional batch-tile override (multiple of 8, or >= B).
      out_block_bytes: cap on the output VMEM tile (default 8 MiB — safe when
                    double-buffered on v7x's 64 MiB VMEM; v5e/v6e could take
                    ~2x, but 8 MiB already amortizes the ~0.35 us/step cost).
    Returns:
      [B, L, D] array with the dtype of `w` (the `latent` field of DataBag).
    """
    B, D = w.shape
    assert len(wplus_shape) == 3, wplus_shape
    L = int(wplus_shape[1])
    assert wplus_shape[0] in (-1, B), (wplus_shape, w.shape)
    assert wplus_shape[2] in (-1, D), (wplus_shape, w.shape)

    itemsize = jnp.dtype(w.dtype).itemsize
    if block_b is None:
        row_bytes = L * D * itemsize
        block_b = max(8, out_block_bytes // max(row_bytes, 1))
        block_b = (block_b // 8) * 8          # keep the (8, 128) rule happy
    if block_b >= B:
        block_b = B                           # full extent: always legal
    grid = (pl.cdiv(B, block_b),)

    out_block = block_b * L * D * itemsize
    in_block = block_b * D * itemsize
    # Double-buffered in+out tiles plus slack; with the 8 MiB out-block cap
    # this is ~20 MiB, well inside every generation's physical VMEM.
    vmem_limit = max(2 * (out_block + in_block) + (4 << 20), 16 << 20)

    flat = pl.pallas_call(
        _w_to_wplus_kernel,
        out_shape=jax.ShapeDtypeStruct((B, L * D), w.dtype),
        grid=grid,
        in_specs=[pl.BlockSpec((block_b, D), lambda i: (i, 0))],
        out_specs=pl.BlockSpec((block_b, L * D), lambda i: (i, 0)),
        compiler_params=pltpu.CompilerParams(
            dimension_semantics=("parallel",),   # shard batch over v7x's 2 TCs
            vmem_limit_bytes=int(vmem_limit),
        ),
    )(w)
    # Reshape [B, L*D] -> [B, L, D]: same row-major layout, free metadata op.
    return flat.reshape(B, L, D)


if __name__ == "__main__":
    # Small shapes consistent with the module: batch=2, num_style_layers=8,
    # latent_dim=32  ->  wplus_shape = (2, 8, 32).
    B, L, D = 2, 8, 32
    wplus_shape = (B, L, D)

    key = jax.random.PRNGKey(0)
    w = jax.random.normal(key, (B, D), dtype=jnp.float32)

    wplus = jax.block_until_ready(input_latent_w_to_wplus(w, wplus_shape))
    ref = jnp.broadcast_to(w[:, None, :], (B, L, D))
    assert wplus.shape == (B, L, D), wplus.shape
    assert wplus.dtype == w.dtype
    assert bool(jnp.all(wplus == ref))

    # Second (still small) case exercising the lane-aligned production path
    # (D % 128 == 0) and a multi-step parallel grid over the batch axis.
    B2, L2, D2 = 16, 4, 128
    w2 = jax.random.normal(jax.random.PRNGKey(1), (B2, D2), dtype=jnp.float32)
    wplus2 = jax.block_until_ready(
        input_latent_w_to_wplus(w2, (B2, L2, D2), block_b=8))
    ref2 = jnp.broadcast_to(w2[:, None, :], (B2, L2, D2))
    assert wplus2.shape == (B2, L2, D2)
    assert bool(jnp.all(wplus2 == ref2))

    # TODO(synk): the PyTorch module wraps the result in DataBag(latent=...);
    # here we return the latent array itself.  Better still, downstream
    # consumers can skip materializing W+ entirely by reading the same [B, D]
    # block for every layer through their own BlockSpec index_map.
    print("KERNEL_OK")
</pallas_src>

<mosaic_0001>
module attributes {stable_mosaic.version = 11 : i64} {
  func.func @_w_to_wplus_kernel(%arg0: i32, %arg1: memref<2x32xf32, #tpu.memory_space<vmem>>, %arg2: memref<2x256xf32, #tpu.memory_space<vmem>>) attributes {dimension_semantics = [#tpu.dimension_semantics<parallel>], iteration_bounds = array<i64: 1>, scalar_prefetch = 0 : i64, scratch_operands = 0 : i64, tpu.core_type = #tpu.core_type<tc>, window_params = [{transform_indices = @transform_0, window_bounds = array<i64: 2, 32>}, {transform_indices = @transform_1, window_bounds = array<i64: 2, 256>}]} {
    %c0 = arith.constant 0 : index
    %c0_0 = arith.constant 0 : index
    %0 = vector.load %arg1[%c0, %c0_0] : memref<2x32xf32, #tpu.memory_space<vmem>>, vector<2x32xf32>
    %1 = tpu.concatenate %0, %0, %0, %0, %0, %0, %0, %0 in 1 : vector<2x32xf32>, vector<2x32xf32>, vector<2x32xf32>, vector<2x32xf32>, vector<2x32xf32>, vector<2x32xf32>, vector<2x32xf32>, vector<2x32xf32> -> vector<2x256xf32>
    %c0_1 = arith.constant 0 : index
    %c0_2 = arith.constant 0 : index
    %2 = vector.load %arg2[%c0_1, %c0_2] : memref<2x256xf32, #tpu.memory_space<vmem>>, vector<2x256xf32>
    tpu.vector_store %arg2[%c0_1, %c0_2], %1 {strides = array<i32>} : memref<2x256xf32, #tpu.memory_space<vmem>>, vector<2x256xf32>,
    return
  }
  func.func @transform_0(%arg0: i32) -> (i32, i32) {
    %c0_i32 = arith.constant 0 : i32
    %c0_i32_0 = arith.constant 0 : i32
    return %arg0, %c0_i32 : i32, i32
  }
  func.func @transform_1(%arg0: i32) -> (i32, i32) {
    %c0_i32 = arith.constant 0 : i32
    %c0_i32_0 = arith.constant 0 : i32
    return %arg0, %c0_i32 : i32, i32
  }
}

</mosaic_0001>

<llo_original>
// kernel: tpu_custom_call.1
$region0: #{tpu_custom_call.1}
  #allocation0 [shape = 'u32[]', space=smem, size = 0x4, offset = 0x4, fixed_abs, tag = 'smem constant byte address 0x4 - core index']
  #allocation1 [shape = 'u32[144,128]{1,0:T(1,128)}', space=vmem, size = 0x12000, scoped, tag = 'internal scratch']
  %s0 = inlined_call_operand.hbm [shape: f32[2,32], index: 0, kind: input, shape index: {}]
  %s1 = inlined_call_operand.hbm [shape: f32[2,256], index: 1, kind: output, shape index: {}]
  %s2 = sld [smem:[#allocation0]]
  $region18: #{tpu_custom_call.1} parent=0
    _
  %s4 = ssub.s32 1, %s2
  %s5 = scalar_select 0, %s4, %s2
  $region1: #{tpu_custom_call.1} parent=0
    #allocation2 [shape = 'u8[1024]{0}', space=vmem, size = 0x400, scoped, tag = 'input window, operand 0, single buffered']
    #allocation3 [shape = 's32[1]{0}', space=sflag, size = 0x4, scoped, tag = 'scoped memory for tpu_custom_call.1']
    #allocation4 [shape = 's32[1]{0}', space=sflag, size = 0x4, scoped, tag = 'scoped memory for tpu_custom_call.1']
    #allocation5 [shape = 'u8[2048]{0}', space=vmem, size = 0x800, scoped, tag = 'output window, operand 0, single buffered']
    %6 = vsyncpa [#allocation3], 0
    %7 = vsyncpa [#allocation4], 0
    // Predicated region
    $region2: #{tpu_custom_call.1} parent=1 // pred_check
      _
    $region3: #{tpu_custom_call.1} parent=1 // pred_check_branch
      %9 = sbr.rel (0) target = $region5
    $region4: #{tpu_custom_call.1} parent=1 // pred_region
      %s11 = ssub.s32 32, 32
      %12 = vsyncadd [#allocation3], %s11
      %s14 = sshll.u32 [#allocation2], 4
      %s15 = int_to_ptr.vmem [resolvable:$true] %s14
      %17 = dma.hbm_to_vmem [thread:$0]  %s0, 32, %s15, [#allocation3]
    $region5: #{tpu_custom_call.1} parent=1 // pred_fallthru
      _
    // Predicated region
    $region6: #{tpu_custom_call.1} parent=1 // pred_check
      _
    $region7: #{tpu_custom_call.1} parent=1 // pred_check_branch
      %19 = sbr.rel (0) target = $region9
    $region8: #{tpu_custom_call.1} parent=1 // pred_region
      %20 = dma.done [#allocation3], 32
    $region9: #{tpu_custom_call.1} parent=1 // pred_fallthru
      _
    %v21 = vld [vmem:[#allocation2] sm:$0x3]
    %23 = vrot.lane.b32.xlu0 %v21, 32
    %v24 = vpop.permute.xlu0 %23
    %26 = vrot.lane.b32.xlu0 %v21, 64
    %v27 = vpop.permute.xlu0 %26
    %29 = vrot.lane.b32.xlu0 %v21, 96
    %v30 = vpop.permute.xlu0 %29
    %vm32 = vcmask 261120
    %v33 = vsel %vm32, %v21, %v24
    %vm34 = vcmask 523264
    %v35 = vsel %vm34, %v33, %v27
    %vm36 = vcmask 785408
    %v37 = vsel %vm36, %v35, %v30
    %v39 = vcombine.low %v37, %v37
    %v41 = vunpack.c.l.s4 1983009808
    %v42 = vunpack.c.0.s8 %v41
    %v43 = vlaneseq
    %v44 = vshrl.u32 %v43, 7
    %v45 = vsub.s32 %v42, %v44
    %v46 = vrot.slane %v39, %v45
    %48 = vst [vmem:[#allocation5] sm:$0xf] %v46
    // Predicated region
    $region10: #{tpu_custom_call.1} parent=1 // pred_check
      _
    $region11: #{tpu_custom_call.1} parent=1 // pred_check_branch
      %50 = sbr.rel (0) target = $region13
    $region12: #{tpu_custom_call.1} parent=1 // pred_region
      %s52 = ssub.s32 64, 64
      %53 = vsyncadd [#allocation4], %s52
      %s55 = sshll.u32 [#allocation5], 4
      %s56 = int_to_ptr.vmem [resolvable:$true] %s55
      %58 = dma.vmem_to_hbm [thread:$0]  %s56, 64, %s1, [#allocation4]
    $region13: #{tpu_custom_call.1} parent=1 // pred_fallthru
      _
    // Predicated region
    $region14: #{tpu_custom_call.1} parent=1 // pred_check
      _
    $region15: #{tpu_custom_call.1} parent=1 // pred_check_branch
      %60 = sbr.rel (0) target = $region17
    $region16: #{tpu_custom_call.1} parent=1 // pred_region
      %61 = dma.done [#allocation4], 64
    $region17: #{tpu_custom_call.1} parent=1 // pred_fallthru
      _
    %62 = vsyncpa [#allocation3], 1
    %63 = vsyncpa [#allocation4], 1

</llo_original>
